<compile_context>
chip_gen: v7x
topology: tpu7x:2x2x1
jax: 0.10.0
libtpu: 0.0.40
codegen_flags: <defaults>
</compile_context>

<pallas_src>
import functools

import jax
import jax.numpy as jnp
from jax.experimental import pallas as pl
from jax.experimental.pallas import tpu as pltpu

ALPHA = 0.25
GAMMA = 2.0
OHEM_PERCENT = 0.3

_LANE = 1024            # logical last dim (8 vregs wide) -> lane-dense loads/stores
_SUBLANE = 8
_MAX_BLOCK_ROWS = 512   # 512 x 1024 x 4B = 2 MiB per f32 buffer per pipeline stage

# Radix-8 levels over the 31-bit non-negative f32 key space (step = 2**shift).
# 8 * 2**28 covers [0, 2**31); each level shrinks the bracket by 8x; the last
# two levels (shift 1, 0) resolve the final bits exactly.
_LEVEL_SHIFTS = (28, 25, 22, 19, 16, 13, 10, 7, 4, 1, 0)
_INF_KEY = 0x7F800000   # bit pattern of +inf; thresholds are clamped here.


def _focal_kernel(out_ref, tgt_ref, focal_ref, *, alpha, gamma, n_valid,
                  block_rows, lane):
    """Elementwise focal loss for one (block_rows, lane) tile."""
    x = out_ref[...].astype(jnp.float32)
    t = tgt_ref[...].astype(jnp.float32)

    # Stable BCE-with-logits; algebraically identical to
    # x - x*t + max(-x,0) + log(exp(-max) + exp(-x-max)), with 1 exp + 1 log1p.
    loss = x - x * t + jnp.maximum(-x, 0.0) + jnp.log1p(jnp.exp(-jnp.abs(x)))

    z = -x * (t * 2.0 - 1.0)
    if gamma == 2.0:
        # exp(2*logsigmoid(z)) == sigmoid(z)^2 ; exact reciprocal (EUP) + free mul.
        s = pl.reciprocal(1.0 + jnp.exp(-z), approx=False)
        focal_factor = s * s
    else:
        invprobs = jnp.minimum(z, 0.0) - jnp.log1p(jnp.exp(-jnp.abs(z)))
        focal_factor = jnp.exp(invprobs * gamma)

    focal = alpha * focal_factor * loss
    # focal >= 0 mathematically (targets in [0,1]); the clamp guarantees the
    # int32 bit pattern is an order-preserving key for the radix select.
    focal = jnp.maximum(focal, 0.0)

    if n_valid is not None:
        # Mask the padded tail to exactly 0.0 in-kernel: zeros never displace a
        # real value from the top-k, so no slicing is needed before selection.
        row = (jax.lax.broadcasted_iota(jnp.int32, focal.shape, 0)
               + pl.program_id(0) * block_rows)
        col = jax.lax.broadcasted_iota(jnp.int32, focal.shape, 1)
        idx = row * lane + col
        focal = jnp.where(idx < n_valid, focal, 0.0)

    focal_ref[...] = focal


def _count_kernel(thr_ref, focal_ref, cnt_ref):
    """Per-block counts of focal elements whose int32 key is >= each threshold.

    thr_ref: (8,) int32 scalar-prefetch thresholds (bit patterns of f32 >= 0).
    cnt_ref: (8, 128) int32 output block; row j is the count for threshold j
             broadcast across lanes (keeps the store lane-dense and vector-only).
    """
    keys = pltpu.bitcast(focal_ref[...], jnp.int32)   # focal >= 0 -> monotone key
    rows = []
    for j in range(8):
        cnt = jnp.sum((keys >= thr_ref[j]).astype(jnp.int32))
        rows.append(jnp.broadcast_to(cnt, (1, 128)))
    cnt_ref[...] = jnp.concatenate(rows, axis=0)


def _pick_layout(n):
    """Pick (rows, block_rows): rows * _LANE >= n, rows % block_rows == 0."""
    rows = -(-n // _LANE)
    rows = -(-rows // _SUBLANE) * _SUBLANE
    if rows <= _MAX_BLOCK_ROWS:
        return rows, rows
    for cand in (512, 256, 128, 64):
        if rows % cand == 0:
            return rows, cand
    rows = -(-rows // 256) * 256
    return rows, 256


def _compute_focal_2d(output, target, *, alpha, gamma):
    """Elementwise focal loss via Pallas; returns ((rows, 1024) f32, n, layout)."""
    out_flat = output.reshape(-1)            # keep original dtypes through DMA
    tgt_flat = target.reshape(-1)
    n = out_flat.shape[0]

    rows, block_rows = _pick_layout(n)
    padded = rows * _LANE
    pad = padded - n
    if pad:
        # TODO(synk): for n not aligned to 8*1024 this still copies the inputs
        # once; removing it entirely would need manual (pl.ANY) DMA of the tail.
        out_flat = jnp.pad(out_flat, (0, pad))
        tgt_flat = jnp.pad(tgt_flat, (0, pad))

    out2 = out_flat.reshape(rows, _LANE)
    tgt2 = tgt_flat.reshape(rows, _LANE)
    nblocks = rows // block_rows

    kernel = functools.partial(
        _focal_kernel, alpha=alpha, gamma=gamma,
        n_valid=(n if pad else None), block_rows=block_rows, lane=_LANE)

    focal2d = pl.pallas_call(
        kernel,
        out_shape=jax.ShapeDtypeStruct((rows, _LANE), jnp.float32),
        grid=(nblocks,),
        in_specs=[pl.BlockSpec((block_rows, _LANE), lambda i: (i, 0)),
                  pl.BlockSpec((block_rows, _LANE), lambda i: (i, 0))],
        out_specs=pl.BlockSpec((block_rows, _LANE), lambda i: (i, 0)),
        compiler_params=pltpu.CompilerParams(
            dimension_semantics=("parallel",),
            vmem_limit_bytes=32 * 1024 * 1024),
    )(out2, tgt2)
    return focal2d, n, block_rows, nblocks


def _kth_largest_value(focal2d, k, block_rows, nblocks):
    """Exact k-th largest focal value via an 11-level radix-8 select.

    Each level is one lane-dense Pallas pass over focal producing per-block
    partial counts for 8 candidate thresholds; the tiny (8,) reduction and the
    bracket update run in XLA on scalars.  Invariant: count(focal >= f32(lo)) >= k.
    """
    count_call = pl.pallas_call(
        _count_kernel,
        out_shape=jax.ShapeDtypeStruct((nblocks * 8, 128), jnp.int32),
        grid_spec=pltpu.PrefetchScalarGridSpec(
            num_scalar_prefetch=1,
            grid=(nblocks,),
            in_specs=[pl.BlockSpec((block_rows, _LANE), lambda i, thr: (i, 0))],
            out_specs=pl.BlockSpec((8, 128), lambda i, thr: (i, 0))),
        compiler_params=pltpu.CompilerParams(
            dimension_semantics=("parallel",),
            vmem_limit_bytes=32 * 1024 * 1024),
    )

    shifts = jnp.array(_LEVEL_SHIFTS, dtype=jnp.uint32)
    k32 = jnp.int32(k)

    def level(i, lo):
        step = jnp.left_shift(jnp.uint32(1), shifts[i])
        # Candidate keys lo + j*step (j=1..8), clamped to +inf's bit pattern so
        # the arithmetic never wraps int32 even for pathologically huge focal.
        thr = jnp.minimum(
            lo.astype(jnp.uint32) + jnp.arange(1, 9, dtype=jnp.uint32) * step,
            jnp.uint32(_INF_KEY)).astype(jnp.int32)
        parts = count_call(thr, focal2d)                             # (nb*8, 128)
        counts = parts.reshape(nblocks, 8, 128)[:, :, 0].sum(axis=0)  # (8,)
        # counts is non-increasing in j: take the largest threshold that still
        # has >= k elements at or above it (keep lo if none does).
        cand = jnp.max(jnp.where(counts >= k32, thr, jnp.int32(0)))
        return jnp.maximum(lo, cand)

    lo = jax.lax.fori_loop(0, len(_LEVEL_SHIFTS), level, jnp.zeros((), jnp.int32))
    return jax.lax.bitcast_convert_type(lo, jnp.float32)


def ohem_focal_loss(output, target, *, alpha=ALPHA, gamma=GAMMA,
                    ohem_percent=OHEM_PERCENT):
    n = int(output.size)
    k = int(ohem_percent * n)
    if k <= 0:
        # Parity with PyTorch: mean of an empty top-k is NaN.
        return jnp.float32(jnp.nan)

    focal2d, _, block_rows, nblocks = _compute_focal_2d(
        output, target, alpha=alpha, gamma=gamma)

    t_val = _kth_largest_value(focal2d, k, block_rows, nblocks)

    # mean(top-k) = ( sum(v > t) + (k - count(v > t)) * t ) / k, t = exact k-th
    # largest.  Padded entries are exactly 0.0 and never satisfy 0 > t (t >= 0),
    # so they contribute nothing.  One fused XLA read of focal.
    gt = focal2d > t_val
    count_gt = jnp.sum(gt.astype(jnp.int32))
    sum_gt = jnp.sum(jnp.where(gt, focal2d, 0.0))
    return (sum_gt + (k - count_gt).astype(jnp.float32) * t_val) / jnp.float32(k)


def _reference(output, target, *, alpha=ALPHA, gamma=GAMMA,
               ohem_percent=OHEM_PERCENT):
    x = output.reshape(-1).astype(jnp.float32)
    t = target.reshape(-1).astype(jnp.float32)
    max_val = jnp.maximum(-x, 0.0)
    loss = x - x * t + max_val + jnp.log(jnp.exp(-max_val) + jnp.exp(-x - max_val))
    invprobs = jax.nn.log_sigmoid(-x * (t * 2.0 - 1.0))
    focal = alpha * jnp.exp(invprobs * gamma) * loss
    k = int(ohem_percent * x.shape[0])
    topk_vals, _ = jax.lax.top_k(focal, k)
    return jnp.mean(topk_vals)


if __name__ == "__main__":
    key = jax.random.PRNGKey(0)
    k_out, k_tgt = jax.random.split(key)

    # Small, conv-like shapes (NCHW logits + binary target of the same shape).
    shape = (2, 4, 16, 16)
    output = jax.random.normal(k_out, shape, dtype=jnp.float32)
    target = jax.random.bernoulli(k_tgt, 0.5, shape).astype(jnp.float32)

    loss_fn = jax.jit(ohem_focal_loss)
    result = jax.block_until_ready(loss_fn(output, target))

    ref = jax.block_until_ready(_reference(output, target))
    assert jnp.allclose(result, ref, rtol=1e-5, atol=1e-5), (result, ref)

    print("KERNEL_OK")
</pallas_src>

<mosaic_0001>
module attributes {stable_mosaic.version = 11 : i64} {
  func.func @_focal_kernel(%arg0: i32, %arg1: memref<8x1024xf32, #tpu.memory_space<vmem>>, %arg2: memref<8x1024xf32, #tpu.memory_space<vmem>>, %arg3: memref<8x1024xf32, #tpu.memory_space<vmem>>) attributes {dimension_semantics = [#tpu.dimension_semantics<parallel>], iteration_bounds = array<i64: 1>, scalar_prefetch = 0 : i64, scratch_operands = 0 : i64, tpu.core_type = #tpu.core_type<tc>, window_params = [{transform_indices = @transform_0, window_bounds = array<i64: 8, 1024>}, {transform_indices = @transform_1, window_bounds = array<i64: 8, 1024>}, {transform_indices = @transform_2, window_bounds = array<i64: 8, 1024>}]} {
    %c0 = arith.constant 0 : index
    %c0_0 = arith.constant 0 : index
    %0 = vector.load %arg1[%c0, %c0_0] : memref<8x1024xf32, #tpu.memory_space<vmem>>, vector<8x1024xf32>
    %c0_1 = arith.constant 0 : index
    %c0_2 = arith.constant 0 : index
    %1 = vector.load %arg2[%c0_1, %c0_2] : memref<8x1024xf32, #tpu.memory_space<vmem>>, vector<8x1024xf32>
    %2 = arith.mulf %0, %1 : vector<8x1024xf32>
    %3 = arith.subf %0, %2 : vector<8x1024xf32>
    %cst = arith.constant 0.000000e+00 : f32
    %4 = vector.broadcast %cst : f32 to vector<8x1024xf32>
    %5 = arith.subf %4, %0 : vector<8x1024xf32>
    %cst_3 = arith.constant 0.000000e+00 : f32
    %6 = vector.broadcast %cst_3 : f32 to vector<8x1024xf32>
    %7 = arith.maximumf %5, %6 : vector<8x1024xf32>
    %8 = arith.addf %3, %7 : vector<8x1024xf32>
    %9 = math.absf %0 : vector<8x1024xf32>
    %cst_4 = arith.constant 0.000000e+00 : f32
    %10 = vector.broadcast %cst_4 : f32 to vector<8x1024xf32>
    %11 = arith.subf %10, %9 : vector<8x1024xf32>
    %12 = math.exp %11 : vector<8x1024xf32>
    %13 = math.log1p %12 : vector<8x1024xf32>
    %14 = arith.addf %8, %13 : vector<8x1024xf32>
    %cst_5 = arith.constant 0.000000e+00 : f32
    %15 = vector.broadcast %cst_5 : f32 to vector<8x1024xf32>
    %16 = arith.subf %15, %0 : vector<8x1024xf32>
    %cst_6 = arith.constant 2.000000e+00 : f32
    %17 = vector.broadcast %cst_6 : f32 to vector<8x1024xf32>
    %18 = arith.mulf %1, %17 : vector<8x1024xf32>
    %cst_7 = arith.constant 1.000000e+00 : f32
    %19 = vector.broadcast %cst_7 : f32 to vector<8x1024xf32>
    %20 = arith.subf %18, %19 : vector<8x1024xf32>
    %21 = arith.mulf %16, %20 : vector<8x1024xf32>
    %cst_8 = arith.constant 0.000000e+00 : f32
    %22 = vector.broadcast %cst_8 : f32 to vector<8x1024xf32>
    %23 = arith.subf %22, %21 : vector<8x1024xf32>
    %24 = math.exp %23 : vector<8x1024xf32>
    %cst_9 = arith.constant 1.000000e+00 : f32
    %25 = vector.broadcast %cst_9 : f32 to vector<8x1024xf32>
    %26 = arith.addf %25, %24 : vector<8x1024xf32>
    %27 = tpu.reciprocal %26 : vector<8x1024xf32> -> vector<8x1024xf32>
    %28 = arith.mulf %27, %27 : vector<8x1024xf32>
    %cst_10 = arith.constant 2.500000e-01 : f32
    %29 = vector.broadcast %cst_10 : f32 to vector<8x1024xf32>
    %30 = arith.mulf %29, %28 : vector<8x1024xf32>
    %31 = arith.mulf %30, %14 : vector<8x1024xf32>
    %cst_11 = arith.constant 0.000000e+00 : f32
    %32 = vector.broadcast %cst_11 : f32 to vector<8x1024xf32>
    %33 = arith.maximumf %31, %32 : vector<8x1024xf32>
    %34 = tpu.iota {dimensions = array<i32: 0>} : vector<8x1024xi32>
    %c8_i32 = arith.constant 8 : i32
    %35 = arith.muli %arg0, %c8_i32 : i32
    %36 = vector.broadcast %35 : i32 to vector<8x1024xi32>
    %37 = arith.addi %34, %36 : vector<8x1024xi32>
    %38 = tpu.iota {dimensions = array<i32: 1>} : vector<8x1024xi32>
    %c1024_i32 = arith.constant 1024 : i32
    %39 = vector.broadcast %c1024_i32 : i32 to vector<8x1024xi32>
    %40 = arith.muli %37, %39 : vector<8x1024xi32>
    %41 = arith.addi %40, %38 : vector<8x1024xi32>
    %c2048_i32 = arith.constant 2048 : i32
    %42 = vector.broadcast %c2048_i32 : i32 to vector<8x1024xi32>
    %43 = arith.cmpi slt, %41, %42 : vector<8x1024xi32>
    %cst_12 = arith.constant 0.000000e+00 : f32
    %44 = vector.broadcast %cst_12 : f32 to vector<8x1024xf32>
    %45 = arith.select %43, %33, %44 : vector<8x1024xi1>, vector<8x1024xf32>
    %c0_13 = arith.constant 0 : index
    %c0_14 = arith.constant 0 : index
    %46 = vector.load %arg3[%c0_13, %c0_14] : memref<8x1024xf32, #tpu.memory_space<vmem>>, vector<8x1024xf32>
    tpu.vector_store %arg3[%c0_13, %c0_14], %45 {strides = array<i32>} : memref<8x1024xf32, #tpu.memory_space<vmem>>, vector<8x1024xf32>,
    return
  }
  func.func @transform_0(%arg0: i32) -> (i32, i32) {
    %c0_i32 = arith.constant 0 : i32
    %c0_i32_0 = arith.constant 0 : i32
    return %arg0, %c0_i32 : i32, i32
  }
  func.func @transform_1(%arg0: i32) -> (i32, i32) {
    %c0_i32 = arith.constant 0 : i32
    %c0_i32_0 = arith.constant 0 : i32
    return %arg0, %c0_i32 : i32, i32
  }
  func.func @transform_2(%arg0: i32) -> (i32, i32) {
    %c0_i32 = arith.constant 0 : i32
    %c0_i32_0 = arith.constant 0 : i32
    return %arg0, %c0_i32 : i32, i32
  }
}

module attributes {stable_mosaic.version = 11 : i64} {
  func.func @_count_kernel(%arg0: i32, %arg1: memref<8xi32, #tpu.memory_space<smem>>, %arg2: memref<8x1024xf32, #tpu.memory_space<vmem>>, %arg3: memref<8x128xi32, #tpu.memory_space<vmem>>) attributes {dimension_semantics = [#tpu.dimension_semantics<parallel>], iteration_bounds = array<i64: 1>, scalar_prefetch = 1 : i64, scratch_operands = 0 : i64, tpu.core_type = #tpu.core_type<tc>, window_params = [{transform_indices = @transform_0, window_bounds = array<i64: 8, 1024>}, {transform_indices = @transform_1, window_bounds = array<i64: 8, 128>}]} {
    %c0 = arith.constant 0 : index
    %c0_0 = arith.constant 0 : index
    %0 = vector.load %arg2[%c0, %c0_0] : memref<8x1024xf32, #tpu.memory_space<vmem>>, vector<8x1024xf32>
    %1 = tpu.bitcast %0 : vector<8x1024xf32> -> vector<8x1024xi32>
    %c0_1 = arith.constant 0 : index
    %2 = memref.load %arg1[%c0_1] : memref<8xi32, #tpu.memory_space<smem>>
    %3 = vector.broadcast %2 : i32 to vector<8x1024xi32>
    %4 = arith.cmpi sge, %1, %3 : vector<8x1024xi32>
    %5 = arith.extui %4 : vector<8x1024xi1> to vector<8x1024xi32>
    %6 = vector.shape_cast %5 : vector<8x1024xi32> to vector<1x8x1024xi32>
    %cst = arith.constant dense<0> : vector<1xi32>
    %7 = vector.multi_reduction <add>, %6, %cst [1, 2] : vector<1x8x1024xi32> to vector<1xi32>
    %8 = vector.shape_cast %7 : vector<1xi32> to vector<1x1x1xi32>
    %9 = vector.extract %8[0, 0, 0] : i32 from vector<1x1x1xi32>
    %10 = vector.broadcast %9 : i32 to vector<1x128xi32>
    %c1 = arith.constant 1 : index
    %11 = memref.load %arg1[%c1] : memref<8xi32, #tpu.memory_space<smem>>
    %12 = vector.broadcast %11 : i32 to vector<8x1024xi32>
    %13 = arith.cmpi sge, %1, %12 : vector<8x1024xi32>
    %14 = arith.extui %13 : vector<8x1024xi1> to vector<8x1024xi32>
    %15 = vector.shape_cast %14 : vector<8x1024xi32> to vector<1x8x1024xi32>
    %cst_2 = arith.constant dense<0> : vector<1xi32>
    %16 = vector.multi_reduction <add>, %15, %cst_2 [1, 2] : vector<1x8x1024xi32> to vector<1xi32>
    %17 = vector.shape_cast %16 : vector<1xi32> to vector<1x1x1xi32>
    %18 = vector.extract %17[0, 0, 0] : i32 from vector<1x1x1xi32>
    %19 = vector.broadcast %18 : i32 to vector<1x128xi32>
    %c2 = arith.constant 2 : index
    %20 = memref.load %arg1[%c2] : memref<8xi32, #tpu.memory_space<smem>>
    %21 = vector.broadcast %20 : i32 to vector<8x1024xi32>
    %22 = arith.cmpi sge, %1, %21 : vector<8x1024xi32>
    %23 = arith.extui %22 : vector<8x1024xi1> to vector<8x1024xi32>
    %24 = vector.shape_cast %23 : vector<8x1024xi32> to vector<1x8x1024xi32>
    %cst_3 = arith.constant dense<0> : vector<1xi32>
    %25 = vector.multi_reduction <add>, %24, %cst_3 [1, 2] : vector<1x8x1024xi32> to vector<1xi32>
    %26 = vector.shape_cast %25 : vector<1xi32> to vector<1x1x1xi32>
    %27 = vector.extract %26[0, 0, 0] : i32 from vector<1x1x1xi32>
    %28 = vector.broadcast %27 : i32 to vector<1x128xi32>
    %c3 = arith.constant 3 : index
    %29 = memref.load %arg1[%c3] : memref<8xi32, #tpu.memory_space<smem>>
    %30 = vector.broadcast %29 : i32 to vector<8x1024xi32>
    %31 = arith.cmpi sge, %1, %30 : vector<8x1024xi32>
    %32 = arith.extui %31 : vector<8x1024xi1> to vector<8x1024xi32>
    %33 = vector.shape_cast %32 : vector<8x1024xi32> to vector<1x8x1024xi32>
    %cst_4 = arith.constant dense<0> : vector<1xi32>
    %34 = vector.multi_reduction <add>, %33, %cst_4 [1, 2] : vector<1x8x1024xi32> to vector<1xi32>
    %35 = vector.shape_cast %34 : vector<1xi32> to vector<1x1x1xi32>
    %36 = vector.extract %35[0, 0, 0] : i32 from vector<1x1x1xi32>
    %37 = vector.broadcast %36 : i32 to vector<1x128xi32>
    %c4 = arith.constant 4 : index
    %38 = memref.load %arg1[%c4] : memref<8xi32, #tpu.memory_space<smem>>
    %39 = vector.broadcast %38 : i32 to vector<8x1024xi32>
    %40 = arith.cmpi sge, %1, %39 : vector<8x1024xi32>
    %41 = arith.extui %40 : vector<8x1024xi1> to vector<8x1024xi32>
    %42 = vector.shape_cast %41 : vector<8x1024xi32> to vector<1x8x1024xi32>
    %cst_5 = arith.constant dense<0> : vector<1xi32>
    %43 = vector.multi_reduction <add>, %42, %cst_5 [1, 2] : vector<1x8x1024xi32> to vector<1xi32>
    %44 = vector.shape_cast %43 : vector<1xi32> to vector<1x1x1xi32>
    %45 = vector.extract %44[0, 0, 0] : i32 from vector<1x1x1xi32>
    %46 = vector.broadcast %45 : i32 to vector<1x128xi32>
    %c5 = arith.constant 5 : index
    %47 = memref.load %arg1[%c5] : memref<8xi32, #tpu.memory_space<smem>>
    %48 = vector.broadcast %47 : i32 to vector<8x1024xi32>
    %49 = arith.cmpi sge, %1, %48 : vector<8x1024xi32>
    %50 = arith.extui %49 : vector<8x1024xi1> to vector<8x1024xi32>
    %51 = vector.shape_cast %50 : vector<8x1024xi32> to vector<1x8x1024xi32>
    %cst_6 = arith.constant dense<0> : vector<1xi32>
    %52 = vector.multi_reduction <add>, %51, %cst_6 [1, 2] : vector<1x8x1024xi32> to vector<1xi32>
    %53 = vector.shape_cast %52 : vector<1xi32> to vector<1x1x1xi32>
    %54 = vector.extract %53[0, 0, 0] : i32 from vector<1x1x1xi32>
    %55 = vector.broadcast %54 : i32 to vector<1x128xi32>
    %c6 = arith.constant 6 : index
    %56 = memref.load %arg1[%c6] : memref<8xi32, #tpu.memory_space<smem>>
    %57 = vector.broadcast %56 : i32 to vector<8x1024xi32>
    %58 = arith.cmpi sge, %1, %57 : vector<8x1024xi32>
    %59 = arith.extui %58 : vector<8x1024xi1> to vector<8x1024xi32>
    %60 = vector.shape_cast %59 : vector<8x1024xi32> to vector<1x8x1024xi32>
    %cst_7 = arith.constant dense<0> : vector<1xi32>
    %61 = vector.multi_reduction <add>, %60, %cst_7 [1, 2] : vector<1x8x1024xi32> to vector<1xi32>
    %62 = vector.shape_cast %61 : vector<1xi32> to vector<1x1x1xi32>
    %63 = vector.extract %62[0, 0, 0] : i32 from vector<1x1x1xi32>
    %64 = vector.broadcast %63 : i32 to vector<1x128xi32>
    %c7 = arith.constant 7 : index
    %65 = memref.load %arg1[%c7] : memref<8xi32, #tpu.memory_space<smem>>
    %66 = vector.broadcast %65 : i32 to vector<8x1024xi32>
    %67 = arith.cmpi sge, %1, %66 : vector<8x1024xi32>
    %68 = arith.extui %67 : vector<8x1024xi1> to vector<8x1024xi32>
    %69 = vector.shape_cast %68 : vector<8x1024xi32> to vector<1x8x1024xi32>
    %cst_8 = arith.constant dense<0> : vector<1xi32>
    %70 = vector.multi_reduction <add>, %69, %cst_8 [1, 2] : vector<1x8x1024xi32> to vector<1xi32>
    %71 = vector.shape_cast %70 : vector<1xi32> to vector<1x1x1xi32>
    %72 = vector.extract %71[0, 0, 0] : i32 from vector<1x1x1xi32>
    %73 = vector.broadcast %72 : i32 to vector<1x128xi32>
    %74 = tpu.concatenate %10, %19, %28, %37, %46, %55, %64, %73 in 0 : vector<1x128xi32>, vector<1x128xi32>, vector<1x128xi32>, vector<1x128xi32>, vector<1x128xi32>, vector<1x128xi32>, vector<1x128xi32>, vector<1x128xi32> -> vector<8x128xi32>
    %c0_9 = arith.constant 0 : index
    %c0_10 = arith.constant 0 : index
    %75 = vector.load %arg3[%c0_9, %c0_10] : memref<8x128xi32, #tpu.memory_space<vmem>>, vector<8x128xi32>
    tpu.vector_store %arg3[%c0_9, %c0_10], %74 {strides = array<i32>} : memref<8x128xi32, #tpu.memory_space<vmem>>, vector<8x128xi32>,
    return
  }
  func.func @transform_0(%arg0: i32, %arg1: memref<8xi32, #tpu.memory_space<smem>>) -> (i32, i32) {
    %c0_i32 = arith.constant 0 : i32
    %c0_i32_0 = arith.constant 0 : i32
    return %arg0, %c0_i32 : i32, i32
  }
  func.func @transform_1(%arg0: i32, %arg1: memref<8xi32, #tpu.memory_space<smem>>) -> (i32, i32) {
    %c0_i32 = arith.constant 0 : i32
    %c0_i32_0 = arith.constant 0 : i32
    return %arg0, %c0_i32 : i32, i32
  }
}

</mosaic_0001>

<llo_original>
// kernel: ohem_focal_loss.1
$region0: #{ohem_focal_loss.1}
  #allocation0 [shape = 'u32[]', space=smem, size = 0x4, offset = 0x4, fixed_abs, tag = 'smem constant byte address 0x4 - core index']
  #allocation1 [shape = 'u32[144,128]{1,0:T(1,128)}', space=vmem, size = 0x12000, scoped, tag = 'internal scratch']
  %s0 = inlined_call_operand.vmem [shape: f32[8,1024], index: 0, kind: input, shape index: {}]
  %s1 = inlined_call_operand.vmem [shape: f32[8,1024], index: 1, kind: input, shape index: {}]
  %s2 = inlined_call_operand.vmem [shape: f32[8,1024], index: 2, kind: output, shape index: {}]
  %s3 = sld [smem:[#allocation0]]
  $region18: #{ohem_focal_loss.1} parent=0
    _
  %s5 = ssub.s32 1, %s3
  %s6 = scalar_select 0, %s5, %s3
  // Predicated region
  $region2: #{ohem_focal_loss.1} parent=0 // pred_check
    _
  $region3: #{ohem_focal_loss.1} parent=0 // pred_check_branch
    %8 = sbr.rel (0) target = $region5
  $region4: #{ohem_focal_loss.1} parent=0 // pred_region
    _
  $region5: #{ohem_focal_loss.1} parent=0 // pred_fallthru
    _
  // Predicated region
  $region6: #{ohem_focal_loss.1} parent=0 // pred_check
    _
  $region7: #{ohem_focal_loss.1} parent=0 // pred_check_branch
    %10 = sbr.rel (0) target = $region9
  $region8: #{ohem_focal_loss.1} parent=0 // pred_region
    _
  $region9: #{ohem_focal_loss.1} parent=0 // pred_fallthru
    _
  %v11 = vld [vmem:[%s0] sm:$0xff]
  %v12 = vld [vmem:[%s0 + $0x8] sm:$0xff]
  %v13 = vld [vmem:[%s0 + $0x10] sm:$0xff]
  %v14 = vld [vmem:[%s0 + $0x18] sm:$0xff]
  %v15 = vld [vmem:[%s0 + $0x20] sm:$0xff]
  %v16 = vld [vmem:[%s0 + $0x28] sm:$0xff]
  %v17 = vld [vmem:[%s0 + $0x30] sm:$0xff]
  %v18 = vld [vmem:[%s0 + $0x38] sm:$0xff]
  %v19 = vld [vmem:[%s1] sm:$0xff]
  %v20 = vld [vmem:[%s1 + $0x8] sm:$0xff]
  %v21 = vld [vmem:[%s1 + $0x10] sm:$0xff]
  %v22 = vld [vmem:[%s1 + $0x18] sm:$0xff]
  %v23 = vld [vmem:[%s1 + $0x20] sm:$0xff]
  %v24 = vld [vmem:[%s1 + $0x28] sm:$0xff]
  %v25 = vld [vmem:[%s1 + $0x30] sm:$0xff]
  %v26 = vld [vmem:[%s1 + $0x38] sm:$0xff]
  %v27 = vmul.f32 %v11, %v19
  %v28 = vmul.f32 %v12, %v20
  %v29 = vmul.f32 %v13, %v21
  %v30 = vmul.f32 %v14, %v22
  %v31 = vmul.f32 %v15, %v23
  %v32 = vmul.f32 %v16, %v24
  %v33 = vmul.f32 %v17, %v25
  %v34 = vmul.f32 %v18, %v26
  %v35 = vsub.f32 %v11, %v27
  %v36 = vsub.f32 %v12, %v28
  %v37 = vsub.f32 %v13, %v29
  %v38 = vsub.f32 %v14, %v30
  %v39 = vsub.f32 %v15, %v31
  %v40 = vsub.f32 %v16, %v32
  %v41 = vsub.f32 %v17, %v33
  %v42 = vsub.f32 %v18, %v34
  %v43 = vsub.f32 0.0, %v11
  %v44 = vsub.f32 0.0, %v12
  %v45 = vsub.f32 0.0, %v13
  %v46 = vsub.f32 0.0, %v14
  %v47 = vsub.f32 0.0, %v15
  %v48 = vsub.f32 0.0, %v16
  %v49 = vsub.f32 0.0, %v17
  %v50 = vsub.f32 0.0, %v18
  %v51 = vmax.f32 %v43, 0.0
  %v52 = vmax.f32 %v44, 0.0
  %v53 = vmax.f32 %v45, 0.0
  %v54 = vmax.f32 %v46, 0.0
  %v55 = vmax.f32 %v47, 0.0
  %v56 = vmax.f32 %v48, 0.0
  %v57 = vmax.f32 %v49, 0.0
  %v58 = vmax.f32 %v50, 0.0
  %v59 = vadd.f32 %v35, %v51
  %v60 = vadd.f32 %v36, %v52
  %v61 = vadd.f32 %v37, %v53
  %v62 = vadd.f32 %v38, %v54
  %v63 = vadd.f32 %v39, %v55
  %v64 = vadd.f32 %v40, %v56
  %v65 = vadd.f32 %v41, %v57
  %v66 = vadd.f32 %v42, %v58
  %v67 = vand.u32 2147483647, %v11
  %v68 = vand.u32 2147483647, %v12
  %v69 = vand.u32 2147483647, %v13
  %v70 = vand.u32 2147483647, %v14
  %v71 = vand.u32 2147483647, %v15
  %v72 = vand.u32 2147483647, %v16
  %v73 = vand.u32 2147483647, %v17
  %v74 = vand.u32 2147483647, %v18
  %v75 = vsub.f32 0.0, %v67
  %v76 = vsub.f32 0.0, %v68
  %v77 = vsub.f32 0.0, %v69
  %v78 = vsub.f32 0.0, %v70
  %v79 = vsub.f32 0.0, %v71
  %v80 = vsub.f32 0.0, %v72
  %v81 = vsub.f32 0.0, %v73
  %v82 = vsub.f32 0.0, %v74
  %v83 = vmul.f32 %v75, 1.442695
  %v84 = vpow.pop %v83
  %v85 = vmul.f32 %v76, 1.442695
  %v86 = vpow.pop %v85
  %v87 = vmul.f32 %v77, 1.442695
  %v88 = vpow.pop %v87
  %v89 = vmul.f32 %v78, 1.442695
  %v90 = vpow.pop %v89
  %v91 = vmul.f32 %v79, 1.442695
  %v92 = vpow.pop %v91
  %v93 = vmul.f32 %v80, 1.442695
  %v94 = vpow.pop %v93
  %v95 = vmul.f32 %v81, 1.442695
  %v96 = vpow.pop %v95
  %v97 = vmul.f32 %v82, 1.442695
  %v98 = vpow.pop %v97
  %v99 = vadd.f32 %v84, 1.0
  %v100 = vlog2.pop %v99
  %v101 = vmul.f32 %v100, 0.6931472
  %v102 = vmul.f32 -0.5, %v84
  %v103 = vadd.f32 %v102, 1.0
  %v104 = vmul.f32 %v103, %v84
  %v105 = vand.u32 2147483647, %v84
  %vm106 = vcmp.lt.f32.partialorder %v105, 0.0004427343
  %v107 = vsel %vm106, %v104, %v101
  %v108 = vadd.f32 %v86, 1.0
  %v109 = vlog2.pop %v108
  %v110 = vmul.f32 %v109, 0.6931472
  %v111 = vmul.f32 -0.5, %v86
  %v112 = vadd.f32 %v111, 1.0
  %v113 = vmul.f32 %v112, %v86
  %v114 = vand.u32 2147483647, %v86
  %vm115 = vcmp.lt.f32.partialorder %v114, 0.0004427343
  %v116 = vsel %vm115, %v113, %v110
  %v117 = vadd.f32 %v88, 1.0
  %v118 = vlog2.pop %v117
  %v119 = vmul.f32 %v118, 0.6931472
  %v120 = vmul.f32 -0.5, %v88
  %v121 = vadd.f32 %v120, 1.0
  %v122 = vmul.f32 %v121, %v88
  %v123 = vand.u32 2147483647, %v88
  %vm124 = vcmp.lt.f32.partialorder %v123, 0.0004427343
  %v125 = vsel %vm124, %v122, %v119
  %v126 = vadd.f32 %v90, 1.0
  %v127 = vlog2.pop %v126
  %v128 = vmul.f32 %v127, 0.6931472
  %v129 = vmul.f32 -0.5, %v90
  %v130 = vadd.f32 %v129, 1.0
  %v131 = vmul.f32 %v130, %v90
  %v132 = vand.u32 2147483647, %v90
  %vm133 = vcmp.lt.f32.partialorder %v132, 0.0004427343
  %v134 = vsel %vm133, %v131, %v128
  %v135 = vadd.f32 %v92, 1.0
  %v136 = vlog2.pop %v135
  %v137 = vmul.f32 %v136, 0.6931472
  %v138 = vmul.f32 -0.5, %v92
  %v139 = vadd.f32 %v138, 1.0
  %v140 = vmul.f32 %v139, %v92
  %v141 = vand.u32 2147483647, %v92
  %vm142 = vcmp.lt.f32.partialorder %v141, 0.0004427343
  %v143 = vsel %vm142, %v140, %v137
  %v144 = vadd.f32 %v94, 1.0
  %v145 = vlog2.pop %v144
  %v146 = vmul.f32 %v145, 0.6931472
  %v147 = vmul.f32 -0.5, %v94
  %v148 = vadd.f32 %v147, 1.0
  %v149 = vmul.f32 %v148, %v94
  %v150 = vand.u32 2147483647, %v94
  %vm151 = vcmp.lt.f32.partialorder %v150, 0.0004427343
  %v152 = vsel %vm151, %v149, %v146
  %v153 = vadd.f32 %v96, 1.0
  %v154 = vlog2.pop %v153
  %v155 = vmul.f32 %v154, 0.6931472
  %v156 = vmul.f32 -0.5, %v96
  %v157 = vadd.f32 %v156, 1.0
  %v158 = vmul.f32 %v157, %v96
  %v159 = vand.u32 2147483647, %v96
  %vm160 = vcmp.lt.f32.partialorder %v159, 0.0004427343
  %v161 = vsel %vm160, %v158, %v155
  %v162 = vadd.f32 %v98, 1.0
  %v163 = vlog2.pop %v162
  %v164 = vmul.f32 %v163, 0.6931472
  %v165 = vmul.f32 -0.5, %v98
  %v166 = vadd.f32 %v165, 1.0
  %v167 = vmul.f32 %v166, %v98
  %v168 = vand.u32 2147483647, %v98
  %vm169 = vcmp.lt.f32.partialorder %v168, 0.0004427343
  %v170 = vsel %vm169, %v167, %v164
  %v171 = vadd.f32 %v59, %v107
  %v172 = vadd.f32 %v60, %v116
  %v173 = vadd.f32 %v61, %v125
  %v174 = vadd.f32 %v62, %v134
  %v175 = vadd.f32 %v63, %v143
  %v176 = vadd.f32 %v64, %v152
  %v177 = vadd.f32 %v65, %v161
  %v178 = vadd.f32 %v66, %v170
  %v179 = vmul.f32 %v19, 2.0
  %v180 = vmul.f32 %v20, 2.0
  %v181 = vmul.f32 %v21, 2.0
  %v182 = vmul.f32 %v22, 2.0
  %v183 = vmul.f32 %v23, 2.0
  %v184 = vmul.f32 %v24, 2.0
  %v185 = vmul.f32 %v25, 2.0
  %v186 = vmul.f32 %v26, 2.0
  %v187 = vsub.f32 %v179, 1.0
  %v188 = vsub.f32 %v180, 1.0
  %v189 = vsub.f32 %v181, 1.0
  %v190 = vsub.f32 %v182, 1.0
  %v191 = vsub.f32 %v183, 1.0
  %v192 = vsub.f32 %v184, 1.0
  %v193 = vsub.f32 %v185, 1.0
  %v194 = vsub.f32 %v186, 1.0
  %v195 = vmul.f32 %v43, %v187
  %v196 = vmul.f32 %v44, %v188
  %v197 = vmul.f32 %v45, %v189
  %v198 = vmul.f32 %v46, %v190
  %v199 = vmul.f32 %v47, %v191
  %v200 = vmul.f32 %v48, %v192
  %v201 = vmul.f32 %v49, %v193
  %v202 = vmul.f32 %v50, %v194
  %v203 = vsub.f32 0.0, %v195
  %v204 = vsub.f32 0.0, %v196
  %v205 = vsub.f32 0.0, %v197
  %v206 = vsub.f32 0.0, %v198
  %v207 = vsub.f32 0.0, %v199
  %v208 = vsub.f32 0.0, %v200
  %v209 = vsub.f32 0.0, %v201
  %v210 = vsub.f32 0.0, %v202
  %v211 = vmul.f32 %v203, 1.442695
  %v212 = vpow.pop %v211
  %v213 = vmul.f32 %v204, 1.442695
  %v214 = vpow.pop %v213
  %v215 = vmul.f32 %v205, 1.442695
  %v216 = vpow.pop %v215
  %v217 = vmul.f32 %v206, 1.442695
  %v218 = vpow.pop %v217
  %v219 = vmul.f32 %v207, 1.442695
  %v220 = vpow.pop %v219
  %v221 = vmul.f32 %v208, 1.442695
  %v222 = vpow.pop %v221
  %v223 = vmul.f32 %v209, 1.442695
  %v224 = vpow.pop %v223
  %v225 = vmul.f32 %v210, 1.442695
  %v226 = vpow.pop %v225
  %v227 = vadd.f32 %v212, 1.0
  %v228 = vadd.f32 %v214, 1.0
  %v229 = vadd.f32 %v216, 1.0
  %v230 = vadd.f32 %v218, 1.0
  %v231 = vadd.f32 %v220, 1.0
  %v232 = vadd.f32 %v222, 1.0
  %v233 = vadd.f32 %v224, 1.0
  %v234 = vadd.f32 %v226, 1.0
  %v235 = vrcp.pop %v227
  %v236 = vrcp.pop %v228
  %v237 = vrcp.pop %v229
  %v238 = vrcp.pop %v230
  %v239 = vrcp.pop %v231
  %v240 = vrcp.pop %v232
  %v241 = vrcp.pop %v233
  %v242 = vrcp.pop %v234
  %v243 = vmul.f32 %v235, %v235
  %v244 = vmul.f32 %v236, %v236
  %v245 = vmul.f32 %v237, %v237
  %v246 = vmul.f32 %v238, %v238
  %v247 = vmul.f32 %v239, %v239
  %v248 = vmul.f32 %v240, %v240
  %v249 = vmul.f32 %v241, %v241
  %v250 = vmul.f32 %v242, %v242
  %v251 = vmul.f32 %v243, 0.25
  %v252 = vmul.f32 %v244, 0.25
  %v253 = vmul.f32 %v245, 0.25
  %v254 = vmul.f32 %v246, 0.25
  %v255 = vmul.f32 %v247, 0.25
  %v256 = vmul.f32 %v248, 0.25
  %v257 = vmul.f32 %v249, 0.25
  %v258 = vmul.f32 %v250, 0.25
  %v259 = vmul.f32 %v251, %v171
  %v260 = vmul.f32 %v252, %v172
  %v261 = vmul.f32 %v253, %v173
  %v262 = vmul.f32 %v254, %v174
  %v263 = vmul.f32 %v255, %v175
  %v264 = vmul.f32 %v256, %v176
  %v265 = vmul.f32 %v257, %v177
  %v266 = vmul.f32 %v258, %v178
  %v267 = vmax.f32 %v259, 0.0
  %v268 = vmax.f32 %v260, 0.0
  %v269 = vmax.f32 %v261, 0.0
  %v270 = vmax.f32 %v262, 0.0
  %v271 = vmax.f32 %v263, 0.0
  %v272 = vmax.f32 %v264, 0.0
  %v273 = vmax.f32 %v265, 0.0
  %v274 = vmax.f32 %v266, 0.0
  %v275 = vlaneseq
  %v276 = vshrl.u32 %v275, 7
  %s277 = smul.u32 0, 8
  %v278 = vstv %s277
  %v279 = vadd.s32 %v276, %v278
  %v280 = vlaneseq
  %v281 = vand.u32 %v280, 127
  %v282 = vadd.s32 %v281, 128
  %v283 = vadd.s32 %v281, 256
  %v284 = vadd.s32 %v281, 384
  %v285 = vadd.s32 %v281, 512
  %v286 = vadd.s32 %v281, 640
  %v287 = vadd.s32 %v281, 768
  %v288 = vadd.s32 %v281, 896
  %v289 = vmul.u32 %v279, 1024
  %v290 = vadd.s32 %v289, %v281
  %v291 = vadd.s32 %v289, %v282
  %v292 = vadd.s32 %v289, %v283
  %v293 = vadd.s32 %v289, %v284
  %v294 = vadd.s32 %v289, %v285
  %v295 = vadd.s32 %v289, %v286
  %v296 = vadd.s32 %v289, %v287
  %v297 = vadd.s32 %v289, %v288
  %vm298 = vcmp.lt.s32.totalorder %v290, 2048
  %vm299 = vcmp.lt.s32.totalorder %v291, 2048
  %vm300 = vcmp.lt.s32.totalorder %v292, 2048
  %vm301 = vcmp.lt.s32.totalorder %v293, 2048
  %vm302 = vcmp.lt.s32.totalorder %v294, 2048
  %vm303 = vcmp.lt.s32.totalorder %v295, 2048
  %vm304 = vcmp.lt.s32.totalorder %v296, 2048
  %vm305 = vcmp.lt.s32.totalorder %v297, 2048
  %v306 = vsel %vm298, %v267, 0.0
  %v307 = vsel %vm299, %v268, 0.0
  %v308 = vsel %vm300, %v269, 0.0
  %v309 = vsel %vm301, %v270, 0.0
  %v310 = vsel %vm302, %v271, 0.0
  %v311 = vsel %vm303, %v272, 0.0
  %v312 = vsel %vm304, %v273, 0.0
  %v313 = vsel %vm305, %v274, 0.0
  %314 = vst [vmem:[%s2] sm:$0xff] %v306
  %315 = vst [vmem:[%s2 + $0x8] sm:$0xff] %v307
  %316 = vst [vmem:[%s2 + $0x10] sm:$0xff] %v308
  %317 = vst [vmem:[%s2 + $0x18] sm:$0xff] %v309
  %318 = vst [vmem:[%s2 + $0x20] sm:$0xff] %v310
  %319 = vst [vmem:[%s2 + $0x28] sm:$0xff] %v311
  %320 = vst [vmem:[%s2 + $0x30] sm:$0xff] %v312
  %321 = vst [vmem:[%s2 + $0x38] sm:$0xff] %v313
  // Predicated region
  $region10: #{ohem_focal_loss.1} parent=0 // pred_check
    _
  $region11: #{ohem_focal_loss.1} parent=0 // pred_check_branch
    %323 = sbr.rel (0) target = $region13
  $region12: #{ohem_focal_loss.1} parent=0 // pred_region
    _
  $region13: #{ohem_focal_loss.1} parent=0 // pred_fallthru
    _
  // Predicated region
  $region14: #{ohem_focal_loss.1} parent=0 // pred_check
    _
  $region15: #{ohem_focal_loss.1} parent=0 // pred_check_branch
    %325 = sbr.rel (0) target = $region17
  $region16: #{ohem_focal_loss.1} parent=0 // pred_region
    _
  $region17: #{ohem_focal_loss.1} parent=0 // pred_fallthru
    _

// kernel: closed_call.10
$region0: #{closed_call.10}
  #allocation0 [shape = 'u32[]', space=smem, size = 0x4, offset = 0x4, fixed_abs, tag = 'smem constant byte address 0x4 - core index']
  #allocation1 [shape = 'u32[144,128]{1,0:T(1,128)}', space=vmem, size = 0x12000, scoped, tag = 'internal scratch']
  #allocation2 [shape = 's32[1]{0}', space=sflag, size = 0x4, scoped, tag = 'scoped memory for closed_call.10']
  #allocation3 [shape = 'u8[512]{0}', space=smem, size = 0x200, scoped, tag = 'prefetched SMEM operand 0']
  %s0 = inlined_call_operand.vmem [shape: s32[8], index: 0, kind: input, shape index: {}]
  %s1 = inlined_call_operand.vmem [shape: f32[8,1024], index: 1, kind: input, shape index: {}]
  %s2 = inlined_call_operand.vmem [shape: s32[8,128], index: 2, kind: output, shape index: {}]
  %s3 = sld [smem:[#allocation0]]
  $region14: #{closed_call.10} parent=0
    _
  %s5 = ssub.s32 1, %s3
  %s6 = scalar_select 0, %s5, %s3
  %s7 = sshll.u32 %s0, 4
  %s8 = int_to_ptr.vmem [resolvable:$true] %s7
  %10 = dma.vmem_to_smem %s8, 16, [#allocation3], [#allocation2]
  %11 = dma.done [#allocation2], 16
  %12 = sfence
  // Predicated region
  $region2: #{closed_call.10} parent=0 // pred_check
    _
  $region3: #{closed_call.10} parent=0 // pred_check_branch
    %14 = sbr.rel (0) target = $region5
  $region4: #{closed_call.10} parent=0 // pred_region
    _
  $region5: #{closed_call.10} parent=0 // pred_fallthru
    _
  %v15 = vld [vmem:[%s1] sm:$0xff]
  %v16 = vld [vmem:[%s1 + $0x8] sm:$0xff]
  %v17 = vld [vmem:[%s1 + $0x10] sm:$0xff]
  %v18 = vld [vmem:[%s1 + $0x18] sm:$0xff]
  %v19 = vld [vmem:[%s1 + $0x20] sm:$0xff]
  %v20 = vld [vmem:[%s1 + $0x28] sm:$0xff]
  %v21 = vld [vmem:[%s1 + $0x30] sm:$0xff]
  %v22 = vld [vmem:[%s1 + $0x38] sm:$0xff]
  %s31 = sld [smem:[#allocation3]]
  %v32 = vstv %s31
  %vm33 = vcmp.ge.s32.totalorder %v15, %v32
  %vm34 = vcmp.ge.s32.totalorder %v16, %v32
  %vm35 = vcmp.ge.s32.totalorder %v17, %v32
  %vm36 = vcmp.ge.s32.totalorder %v18, %v32
  %vm37 = vcmp.ge.s32.totalorder %v19, %v32
  %vm38 = vcmp.ge.s32.totalorder %v20, %v32
  %vm39 = vcmp.ge.s32.totalorder %v21, %v32
  %vm40 = vcmp.ge.s32.totalorder %v22, %v32
  %v41 = vsel %vm33, 1, 0
  %v42 = vsel %vm34, 1, 0
  %v43 = vsel %vm35, 1, 0
  %v44 = vsel %vm36, 1, 0
  %v45 = vsel %vm37, 1, 0
  %v46 = vsel %vm38, 1, 0
  %v47 = vsel %vm39, 1, 0
  %v48 = vsel %vm40, 1, 0
  %v49 = vadd.s32 %v41, %v45
  %v50 = vadd.s32 %v42, %v46
  %v51 = vadd.s32 %v43, %v47
  %v52 = vadd.s32 %v44, %v48
  %v53 = vadd.s32 %v49, %v50
  %v54 = vadd.s32 %v51, %v52
  %v55 = vadd.s32 %v53, %v54
  %v56 = vand.u32 %v55, 65535
  %v57 = vshrl.u32 %v55, 16
  %v58 = vcvt.s32.f32 %v56
  %v59 = vcvt.s32.f32 %v57
  %60 = vadd.xlane.f32.xlu0 %v58
  %v61 = vpop.xlane.xlu0 %60
  %62 = vadd.xlane.f32.xlu0 %v59
  %v63 = vpop.xlane.xlu0 %62
  %v64 = vcvt.f32.s32 %v61
  %v65 = vcvt.f32.s32 %v63
  %v66 = vshll.u32 %v65, 16
  %v67 = vadd.s32 %v66, %v64
  %v68 = vrot.slane %v67, 4
  %v69 = vadd.s32 %v67, %v68
  %v70 = vrot.slane %v69, 2
  %v71 = vadd.s32 %v69, %v70
  %v72 = vrot.slane %v71, 1
  %v73 = vadd.s32 %v71, %v72
  %s74 = vtos %v73
  %v75 = vstv %s74
  %s76 = sld [smem:[#allocation3 + $0x1]]
  %v77 = vstv %s76
  %vm78 = vcmp.ge.s32.totalorder %v15, %v77
  %vm79 = vcmp.ge.s32.totalorder %v16, %v77
  %vm80 = vcmp.ge.s32.totalorder %v17, %v77
  %vm81 = vcmp.ge.s32.totalorder %v18, %v77
  %vm82 = vcmp.ge.s32.totalorder %v19, %v77
  %vm83 = vcmp.ge.s32.totalorder %v20, %v77
  %vm84 = vcmp.ge.s32.totalorder %v21, %v77
  %vm85 = vcmp.ge.s32.totalorder %v22, %v77
  %v86 = vsel %vm78, 1, 0
  %v87 = vsel %vm79, 1, 0
  %v88 = vsel %vm80, 1, 0
  %v89 = vsel %vm81, 1, 0
  %v90 = vsel %vm82, 1, 0
  %v91 = vsel %vm83, 1, 0
  %v92 = vsel %vm84, 1, 0
  %v93 = vsel %vm85, 1, 0
  %v94 = vadd.s32 %v86, %v90
  %v95 = vadd.s32 %v87, %v91
  %v96 = vadd.s32 %v88, %v92
  %v97 = vadd.s32 %v89, %v93
  %v98 = vadd.s32 %v94, %v95
  %v99 = vadd.s32 %v96, %v97
  %v100 = vadd.s32 %v98, %v99
  %v101 = vand.u32 %v100, 65535
  %v102 = vshrl.u32 %v100, 16
  %v103 = vcvt.s32.f32 %v101
  %v104 = vcvt.s32.f32 %v102
  %105 = vadd.xlane.f32.xlu0 %v103
  %v106 = vpop.xlane.xlu0 %105
  %107 = vadd.xlane.f32.xlu0 %v104
  %v108 = vpop.xlane.xlu0 %107
  %v109 = vcvt.f32.s32 %v106
  %v110 = vcvt.f32.s32 %v108
  %v111 = vshll.u32 %v110, 16
  %v112 = vadd.s32 %v111, %v109
  %v113 = vrot.slane %v112, 4
  %v114 = vadd.s32 %v112, %v113
  %v115 = vrot.slane %v114, 2
  %v116 = vadd.s32 %v114, %v115
  %v117 = vrot.slane %v116, 1
  %v118 = vadd.s32 %v116, %v117
  %s119 = vtos %v118
  %v120 = vstv %s119
  %s121 = sld [smem:[#allocation3 + $0x2]]
  %v122 = vstv %s121
  %vm123 = vcmp.ge.s32.totalorder %v15, %v122
  %vm124 = vcmp.ge.s32.totalorder %v16, %v122
  %vm125 = vcmp.ge.s32.totalorder %v17, %v122
  %vm126 = vcmp.ge.s32.totalorder %v18, %v122
  %vm127 = vcmp.ge.s32.totalorder %v19, %v122
  %vm128 = vcmp.ge.s32.totalorder %v20, %v122
  %vm129 = vcmp.ge.s32.totalorder %v21, %v122
  %vm130 = vcmp.ge.s32.totalorder %v22, %v122
  %v131 = vsel %vm123, 1, 0
  %v132 = vsel %vm124, 1, 0
  %v133 = vsel %vm125, 1, 0
  %v134 = vsel %vm126, 1, 0
  %v135 = vsel %vm127, 1, 0
  %v136 = vsel %vm128, 1, 0
  %v137 = vsel %vm129, 1, 0
  %v138 = vsel %vm130, 1, 0
  %v139 = vadd.s32 %v131, %v135
  %v140 = vadd.s32 %v132, %v136
  %v141 = vadd.s32 %v133, %v137
  %v142 = vadd.s32 %v134, %v138
  %v143 = vadd.s32 %v139, %v140
  %v144 = vadd.s32 %v141, %v142
  %v145 = vadd.s32 %v143, %v144
  %v146 = vand.u32 %v145, 65535
  %v147 = vshrl.u32 %v145, 16
  %v148 = vcvt.s32.f32 %v146
  %v149 = vcvt.s32.f32 %v147
  %150 = vadd.xlane.f32.xlu0 %v148
  %v151 = vpop.xlane.xlu0 %150
  %152 = vadd.xlane.f32.xlu0 %v149
  %v153 = vpop.xlane.xlu0 %152
  %v154 = vcvt.f32.s32 %v151
  %v155 = vcvt.f32.s32 %v153
  %v156 = vshll.u32 %v155, 16
  %v157 = vadd.s32 %v156, %v154
  %v158 = vrot.slane %v157, 4
  %v159 = vadd.s32 %v157, %v158
  %v160 = vrot.slane %v159, 2
  %v161 = vadd.s32 %v159, %v160
  %v162 = vrot.slane %v161, 1
  %v163 = vadd.s32 %v161, %v162
  %s164 = vtos %v163
  %v165 = vstv %s164
  %s166 = sld [smem:[#allocation3 + $0x3]]
  %v167 = vstv %s166
  %vm168 = vcmp.ge.s32.totalorder %v15, %v167
  %vm169 = vcmp.ge.s32.totalorder %v16, %v167
  %vm170 = vcmp.ge.s32.totalorder %v17, %v167
  %vm171 = vcmp.ge.s32.totalorder %v18, %v167
  %vm172 = vcmp.ge.s32.totalorder %v19, %v167
  %vm173 = vcmp.ge.s32.totalorder %v20, %v167
  %vm174 = vcmp.ge.s32.totalorder %v21, %v167
  %vm175 = vcmp.ge.s32.totalorder %v22, %v167
  %v176 = vsel %vm168, 1, 0
  %v177 = vsel %vm169, 1, 0
  %v178 = vsel %vm170, 1, 0
  %v179 = vsel %vm171, 1, 0
  %v180 = vsel %vm172, 1, 0
  %v181 = vsel %vm173, 1, 0
  %v182 = vsel %vm174, 1, 0
  %v183 = vsel %vm175, 1, 0
  %v184 = vadd.s32 %v176, %v180
  %v185 = vadd.s32 %v177, %v181
  %v186 = vadd.s32 %v178, %v182
  %v187 = vadd.s32 %v179, %v183
  %v188 = vadd.s32 %v184, %v185
  %v189 = vadd.s32 %v186, %v187
  %v190 = vadd.s32 %v188, %v189
  %v191 = vand.u32 %v190, 65535
  %v192 = vshrl.u32 %v190, 16
  %v193 = vcvt.s32.f32 %v191
  %v194 = vcvt.s32.f32 %v192
  %195 = vadd.xlane.f32.xlu0 %v193
  %v196 = vpop.xlane.xlu0 %195
  %197 = vadd.xlane.f32.xlu0 %v194
  %v198 = vpop.xlane.xlu0 %197
  %v199 = vcvt.f32.s32 %v196
  %v200 = vcvt.f32.s32 %v198
  %v201 = vshll.u32 %v200, 16
  %v202 = vadd.s32 %v201, %v199
  %v203 = vrot.slane %v202, 4
  %v204 = vadd.s32 %v202, %v203
  %v205 = vrot.slane %v204, 2
  %v206 = vadd.s32 %v204, %v205
  %v207 = vrot.slane %v206, 1
  %v208 = vadd.s32 %v206, %v207
  %s209 = vtos %v208
  %v210 = vstv %s209
  %s211 = sld [smem:[#allocation3 + $0x4]]
  %v212 = vstv %s211
  %vm213 = vcmp.ge.s32.totalorder %v15, %v212
  %vm214 = vcmp.ge.s32.totalorder %v16, %v212
  %vm215 = vcmp.ge.s32.totalorder %v17, %v212
  %vm216 = vcmp.ge.s32.totalorder %v18, %v212
  %vm217 = vcmp.ge.s32.totalorder %v19, %v212
  %vm218 = vcmp.ge.s32.totalorder %v20, %v212
  %vm219 = vcmp.ge.s32.totalorder %v21, %v212
  %vm220 = vcmp.ge.s32.totalorder %v22, %v212
  %v221 = vsel %vm213, 1, 0
  %v222 = vsel %vm214, 1, 0
  %v223 = vsel %vm215, 1, 0
  %v224 = vsel %vm216, 1, 0
  %v225 = vsel %vm217, 1, 0
  %v226 = vsel %vm218, 1, 0
  %v227 = vsel %vm219, 1, 0
  %v228 = vsel %vm220, 1, 0
  %v229 = vadd.s32 %v221, %v225
  %v230 = vadd.s32 %v222, %v226
  %v231 = vadd.s32 %v223, %v227
  %v232 = vadd.s32 %v224, %v228
  %v233 = vadd.s32 %v229, %v230
  %v234 = vadd.s32 %v231, %v232
  %v235 = vadd.s32 %v233, %v234
  %v236 = vand.u32 %v235, 65535
  %v237 = vshrl.u32 %v235, 16
  %v238 = vcvt.s32.f32 %v236
  %v239 = vcvt.s32.f32 %v237
  %240 = vadd.xlane.f32.xlu0 %v238
  %v241 = vpop.xlane.xlu0 %240
  %242 = vadd.xlane.f32.xlu0 %v239
  %v243 = vpop.xlane.xlu0 %242
  %v244 = vcvt.f32.s32 %v241
  %v245 = vcvt.f32.s32 %v243
  %v246 = vshll.u32 %v245, 16
  %v247 = vadd.s32 %v246, %v244
  %v248 = vrot.slane %v247, 4
  %v249 = vadd.s32 %v247, %v248
  %v250 = vrot.slane %v249, 2
  %v251 = vadd.s32 %v249, %v250
  %v252 = vrot.slane %v251, 1
  %v253 = vadd.s32 %v251, %v252
  %s254 = vtos %v253
  %v255 = vstv %s254
  %s256 = sld [smem:[#allocation3 + $0x5]]
  %v257 = vstv %s256
  %vm258 = vcmp.ge.s32.totalorder %v15, %v257
  %vm259 = vcmp.ge.s32.totalorder %v16, %v257
  %vm260 = vcmp.ge.s32.totalorder %v17, %v257
  %vm261 = vcmp.ge.s32.totalorder %v18, %v257
  %vm262 = vcmp.ge.s32.totalorder %v19, %v257
  %vm263 = vcmp.ge.s32.totalorder %v20, %v257
  %vm264 = vcmp.ge.s32.totalorder %v21, %v257
  %vm265 = vcmp.ge.s32.totalorder %v22, %v257
  %v266 = vsel %vm258, 1, 0
  %v267 = vsel %vm259, 1, 0
  %v268 = vsel %vm260, 1, 0
  %v269 = vsel %vm261, 1, 0
  %v270 = vsel %vm262, 1, 0
  %v271 = vsel %vm263, 1, 0
  %v272 = vsel %vm264, 1, 0
  %v273 = vsel %vm265, 1, 0
  %v274 = vadd.s32 %v266, %v270
  %v275 = vadd.s32 %v267, %v271
  %v276 = vadd.s32 %v268, %v272
  %v277 = vadd.s32 %v269, %v273
  %v278 = vadd.s32 %v274, %v275
  %v279 = vadd.s32 %v276, %v277
  %v280 = vadd.s32 %v278, %v279
  %v281 = vand.u32 %v280, 65535
  %v282 = vshrl.u32 %v280, 16
  %v283 = vcvt.s32.f32 %v281
  %v284 = vcvt.s32.f32 %v282
  %285 = vadd.xlane.f32.xlu0 %v283
  %v286 = vpop.xlane.xlu0 %285
  %287 = vadd.xlane.f32.xlu0 %v284
  %v288 = vpop.xlane.xlu0 %287
  %v289 = vcvt.f32.s32 %v286
  %v290 = vcvt.f32.s32 %v288
  %v291 = vshll.u32 %v290, 16
  %v292 = vadd.s32 %v291, %v289
  %v293 = vrot.slane %v292, 4
  %v294 = vadd.s32 %v292, %v293
  %v295 = vrot.slane %v294, 2
  %v296 = vadd.s32 %v294, %v295
  %v297 = vrot.slane %v296, 1
  %v298 = vadd.s32 %v296, %v297
  %s299 = vtos %v298
  %v300 = vstv %s299
  %s301 = sld [smem:[#allocation3 + $0x6]]
  %v302 = vstv %s301
  %vm303 = vcmp.ge.s32.totalorder %v15, %v302
  %vm304 = vcmp.ge.s32.totalorder %v16, %v302
  %vm305 = vcmp.ge.s32.totalorder %v17, %v302
  %vm306 = vcmp.ge.s32.totalorder %v18, %v302
  %vm307 = vcmp.ge.s32.totalorder %v19, %v302
  %vm308 = vcmp.ge.s32.totalorder %v20, %v302
  %vm309 = vcmp.ge.s32.totalorder %v21, %v302
  %vm310 = vcmp.ge.s32.totalorder %v22, %v302
  %v311 = vsel %vm303, 1, 0
  %v312 = vsel %vm304, 1, 0
  %v313 = vsel %vm305, 1, 0
  %v314 = vsel %vm306, 1, 0
  %v315 = vsel %vm307, 1, 0
  %v316 = vsel %vm308, 1, 0
  %v317 = vsel %vm309, 1, 0
  %v318 = vsel %vm310, 1, 0
  %v319 = vadd.s32 %v311, %v315
  %v320 = vadd.s32 %v312, %v316
  %v321 = vadd.s32 %v313, %v317
  %v322 = vadd.s32 %v314, %v318
  %v323 = vadd.s32 %v319, %v320
  %v324 = vadd.s32 %v321, %v322
  %v325 = vadd.s32 %v323, %v324
  %v326 = vand.u32 %v325, 65535
  %v327 = vshrl.u32 %v325, 16
  %v328 = vcvt.s32.f32 %v326
  %v329 = vcvt.s32.f32 %v327
  %330 = vadd.xlane.f32.xlu0 %v328
  %v331 = vpop.xlane.xlu0 %330
  %332 = vadd.xlane.f32.xlu0 %v329
  %v333 = vpop.xlane.xlu0 %332
  %v334 = vcvt.f32.s32 %v331
  %v335 = vcvt.f32.s32 %v333
  %v336 = vshll.u32 %v335, 16
  %v337 = vadd.s32 %v336, %v334
  %v338 = vrot.slane %v337, 4
  %v339 = vadd.s32 %v337, %v338
  %v340 = vrot.slane %v339, 2
  %v341 = vadd.s32 %v339, %v340
  %v342 = vrot.slane %v341, 1
  %v343 = vadd.s32 %v341, %v342
  %s344 = vtos %v343
  %v345 = vstv %s344
  %s346 = sld [smem:[#allocation3 + $0x7]]
  %v347 = vstv %s346
  %vm348 = vcmp.ge.s32.totalorder %v15, %v347
  %vm349 = vcmp.ge.s32.totalorder %v16, %v347
  %vm350 = vcmp.ge.s32.totalorder %v17, %v347
  %vm351 = vcmp.ge.s32.totalorder %v18, %v347
  %vm352 = vcmp.ge.s32.totalorder %v19, %v347
  %vm353 = vcmp.ge.s32.totalorder %v20, %v347
  %vm354 = vcmp.ge.s32.totalorder %v21, %v347
  %vm355 = vcmp.ge.s32.totalorder %v22, %v347
  %v356 = vsel %vm348, 1, 0
  %v357 = vsel %vm349, 1, 0
  %v358 = vsel %vm350, 1, 0
  %v359 = vsel %vm351, 1, 0
  %v360 = vsel %vm352, 1, 0
  %v361 = vsel %vm353, 1, 0
  %v362 = vsel %vm354, 1, 0
  %v363 = vsel %vm355, 1, 0
  %v364 = vadd.s32 %v356, %v360
  %v365 = vadd.s32 %v357, %v361
  %v366 = vadd.s32 %v358, %v362
  %v367 = vadd.s32 %v359, %v363
  %v368 = vadd.s32 %v364, %v365
  %v369 = vadd.s32 %v366, %v367
  %v370 = vadd.s32 %v368, %v369
  %v371 = vand.u32 %v370, 65535
  %v372 = vshrl.u32 %v370, 16
  %v373 = vcvt.s32.f32 %v371
  %v374 = vcvt.s32.f32 %v372
  %375 = vadd.xlane.f32.xlu0 %v373
  %v376 = vpop.xlane.xlu0 %375
  %377 = vadd.xlane.f32.xlu0 %v374
  %v378 = vpop.xlane.xlu0 %377
  %v379 = vcvt.f32.s32 %v376
  %v380 = vcvt.f32.s32 %v378
  %v381 = vshll.u32 %v380, 16
  %v382 = vadd.s32 %v381, %v379
  %v383 = vrot.slane %v382, 4
  %v384 = vadd.s32 %v382, %v383
  %v385 = vrot.slane %v384, 2
  %v386 = vadd.s32 %v384, %v385
  %v387 = vrot.slane %v386, 1
  %v388 = vadd.s32 %v386, %v387
  %s389 = vtos %v388
  %v390 = vstv %s389
  %vm391 = vcmask 1040384
  %v392 = vsel %vm391, %v75, %v120
  %vm393 = vcmask 1041408
  %v394 = vsel %vm393, %v392, %v165
  %vm395 = vcmask 1042432
  %v396 = vsel %vm395, %v394, %v210
  %vm397 = vcmask 1043456
  %v398 = vsel %vm397, %v396, %v255
  %vm399 = vcmask 1044480
  %v400 = vsel %vm399, %v398, %v300
  %vm401 = vcmask 1045504
  %v402 = vsel %vm401, %v400, %v345
  %vm403 = vcmask 1046528
  %v404 = vsel %vm403, %v402, %v390
  %405 = vst [vmem:[%s2] sm:$0xff] %v404
  // Predicated region
  $region6: #{closed_call.10} parent=0 // pred_check
    _
  $region7: #{closed_call.10} parent=0 // pred_check_branch
    %407 = sbr.rel (0) target = $region9
  $region8: #{closed_call.10} parent=0 // pred_region
    _
  $region9: #{closed_call.10} parent=0 // pred_fallthru
    _
  // Predicated region
  $region10: #{closed_call.10} parent=0 // pred_check
    _
  $region11: #{closed_call.10} parent=0 // pred_check_branch
    %409 = sbr.rel (0) target = $region13
  $region12: #{closed_call.10} parent=0 // pred_region
    _
  $region13: #{closed_call.10} parent=0 // pred_fallthru
    _

</llo_original>
